<compile_context>
chip_gen: v7x
topology: tpu7x:2x2x1
jax: 0.10.0
libtpu: 0.0.40
codegen_flags: <defaults>
</compile_context>

<pallas_src>
import functools
import math

import jax
import jax.numpy as jnp
from jax.experimental import pallas as pl
from jax.experimental.pallas import tpu as pltpu


def _round_up(x, m):
    return (x + m - 1) // m * m


def _decoder_block_kernel(top_ref, x_ref, bot_ref, w_ref, b_ref, m_ref, o_ref, *, W):
    """Fused 3x3 SAME conv + bias + ReLU for one (batch, H-tile) block.

    top_ref : (Cin, W128)   f32   lane-block just before the body (holds row t*Ht-1)
    x_ref   : (Cin, Ht*W)   f32   body rows [t*Ht, (t+1)*Ht) flattened along lanes
    bot_ref : (Cin, W128)   f32   lane-block just after the body (holds row (t+1)*Ht)
    w_ref   : (Cout, 9*Cin) bf16  folded conv weight, col = (kh*3+kw)*Cin + ci
    b_ref   : (Cout, 1)     f32   folded bias
    m_ref   : (2, Ht*W)     bf16  0/1 masks: row 0 zero where w==0, row 1 zero where w==W-1
    o_ref   : (Cout, Ht*W)  out   lane-dense NCHW output slab
    """
    Cin, HtW = x_ref.shape
    W128 = top_ref.shape[1]
    cdt = w_ref.dtype
    t = pl.program_id(1)
    T = pl.num_programs(1)

    body = x_ref[...].astype(cdt)                                   # (Cin, Ht*W)
    # 1-row halos; zeroed at the true image top / bottom boundary.
    top_keep = jnp.where(t > 0, 1.0, 0.0).astype(cdt)
    bot_keep = jnp.where(t < T - 1, 1.0, 0.0).astype(cdt)
    top = top_ref[:, W128 - W:].astype(cdt) * top_keep              # (Cin, W)  row t*Ht-1
    bot = bot_ref[:, :W].astype(cdt) * bot_keep                     # (Cin, W)  row (t+1)*Ht
    zcol = jnp.zeros((Cin, 1), cdt)

    # (Cin, (Ht+2)*W + 2): zero col | top halo | body | bottom halo | zero col
    tile = jnp.concatenate([zcol, top, body, bot, zcol], axis=1)

    mask_l = m_ref[0:1, :]                                          # zero where w == 0
    mask_r = m_ref[1:2, :]                                          # zero where w == W-1

    # im2col: tap (kh, kw) for output position o is tile[:, o + kh*W + kw]; the two masks
    # implement the left/right zero padding of the W axis.
    taps = []
    for kh in range(3):
        for kw in range(3):
            tap = tile[:, kh * W + kw: kh * W + kw + HtW]           # (Cin, Ht*W)
            if kw == 0:
                tap = tap * mask_l
            elif kw == 2:
                tap = tap * mask_r
            taps.append(tap)
    patches = jnp.concatenate(taps, axis=0)                         # (9*Cin, Ht*W)

    # Single MXU matmul with f32 accumulation; f32 epilogue (v5e-friendly).
    acc = jnp.dot(w_ref[...], patches, preferred_element_type=jnp.float32)  # (Cout, Ht*W)
    o_ref[...] = jnp.maximum(acc + b_ref[...], 0.0).astype(o_ref.dtype)


@functools.partial(jax.jit,
                   static_argnames=("eps", "h_tile", "compute_dtype", "out_dtype"))
def decoder_block_forward(x, wt, bt, bn_gamma, bn_beta, bn_mean, bn_var, *,
                          eps=1e-5, h_tile=None, compute_dtype=jnp.bfloat16,
                          out_dtype=jnp.float32):
    """_DecoderBlock forward: ConvTranspose2d(3, s=1, p=1) -> BatchNorm2d(eval) -> ReLU.

    x: (N, Cin, H, W) f32; wt: (Cin, Cout, 3, 3) ConvTranspose weight; bt: (Cout,);
    bn_*: BatchNorm2d(Cout) eval-mode params / running statistics.  Returns NCHW.
    """
    N, Cin, H, W = x.shape
    Cout = wt.shape[1]
    f32 = jnp.float32

    # ---- fold ConvTranspose2d(k=3,s=1,p=1) into an equivalent SAME conv, fold BN ----
    wc = jnp.transpose(jnp.flip(wt, axis=(2, 3)), (1, 0, 2, 3))      # (Cout, Cin, 3, 3)
    s = bn_gamma / jnp.sqrt(bn_var + eps)
    w_eff = wc * s[:, None, None, None]
    b_eff = (bt - bn_mean) * s + bn_beta
    # TODO(synk): training-mode BatchNorm (batch statistics) is not implemented; BN is
    # applied in eval mode (running stats) and folded into the conv.
    # TODO(synk): only the default module path (separable_conv=False) is implemented.
    w_mat = jnp.transpose(w_eff, (0, 2, 3, 1)).reshape(Cout, 9 * Cin).astype(compute_dtype)
    b_col = b_eff.reshape(Cout, 1).astype(f32)

    # ---- tile-size selection (VMEM-budget driven; v7x-safe) ----
    W128 = _round_up(W, 128)                     # lane width of the halo blocks
    step = W128 // math.gcd(W, W128)             # Ht must be a multiple of this
    try:
        vmem_cap = int(pltpu.get_tpu_info().vmem_capacity_bytes)
    except Exception:
        vmem_cap = 64 * 2 ** 20
    budget = min(vmem_cap // 2, 48 * 2 ** 20)
    cbytes = jnp.dtype(compute_dtype).itemsize
    obytes = jnp.dtype(out_dtype).itemsize
    per_row = W * (2 * 4 * Cin + 2 * obytes * Cout          # double-buffered in/out tiles
                   + (2 + 2 * 9) * cbytes * Cin             # tile_ext + taps + patches
                   + 4 * Cout)                               # f32 accumulator
    fixed = Cout * 9 * Cin * cbytes + Cout * 4 + 2 * 2 ** 20
    if h_tile is None:
        avail = max(budget - fixed, per_row * step)
        ht = max(step, (avail // per_row) // step * step)
    else:
        ht = _round_up(int(h_tile), step)
    Ht = min(_round_up(H, step), ht)
    Hp = _round_up(H, Ht)                        # pad H (and crop after) if not divisible
    T = Hp // Ht
    HtW = Ht * W
    nb = HtW // W128                             # 128-lane blocks per body tile
    n_lblk = (Hp * W) // W128                    # 128-lane blocks per image

    xr = x if Hp == H else jnp.pad(x, ((0, 0), (0, 0), (0, Hp - H), (0, 0)))
    x_flat = xr.reshape(N, Cin, Hp * W)          # contiguous reshape: no copy, no transpose

    # 0/1 masks implementing the left/right zero padding of the W axis (tiny, resident).
    w_ids = jnp.arange(HtW, dtype=jnp.int32) % W
    masks = jnp.stack([(w_ids != 0), (w_ids != W - 1)]).astype(compute_dtype)  # (2, HtW)

    kernel = functools.partial(_decoder_block_kernel, W=W)

    in_specs = [
        # 128-lane block just before the body tile (its last W lanes = top halo row)
        pl.BlockSpec((None, Cin, W128),
                     lambda n, t: (n, 0, jnp.maximum(t * nb - 1, 0))),
        # body tile: rows [t*Ht, (t+1)*Ht) flattened along lanes
        pl.BlockSpec((None, Cin, HtW), lambda n, t: (n, 0, t)),
        # 128-lane block just after the body tile (its first W lanes = bottom halo row)
        pl.BlockSpec((None, Cin, W128),
                     lambda n, t: (n, 0, jnp.minimum((t + 1) * nb, n_lblk - 1))),
        pl.BlockSpec((Cout, 9 * Cin), lambda n, t: (0, 0)),
        pl.BlockSpec((Cout, 1), lambda n, t: (0, 0)),
        pl.BlockSpec((2, HtW), lambda n, t: (0, 0)),
    ]
    out_spec = pl.BlockSpec((None, Cout, HtW), lambda n, t: (n, 0, t))

    vmem_limit = int(min(max(per_row * Ht + fixed, 16 * 2 ** 20), 64 * 2 ** 20))
    cost = pl.CostEstimate(
        flops=2 * N * Hp * W * Cout * 9 * Cin,
        transcendentals=0,
        bytes_accessed=(N * Cin * Hp * W * 4 + N * Cout * Hp * W * obytes
                        + Cout * 9 * Cin * cbytes),
    )

    out = pl.pallas_call(
        kernel,
        out_shape=jax.ShapeDtypeStruct((N, Cout, Hp * W), out_dtype),
        grid=(N, T),
        in_specs=in_specs,
        out_specs=out_spec,
        compiler_params=pltpu.CompilerParams(
            dimension_semantics=("parallel", "parallel"),
            vmem_limit_bytes=vmem_limit,
        ),
        cost_estimate=cost,
    )(x_flat, x_flat, x_flat, w_mat, b_col, masks)

    out = out.reshape(N, Cout, Hp, W)            # already NCHW: free reshape, no transpose
    if Hp != H:
        out = out[:, :, :H, :]
    return out


def _ref_decoder_block(x, wt, bt, gamma, beta, mean, var, eps=1e-5):
    """Pure-JAX f32 reference mirroring the PyTorch forward (eval-mode BN)."""
    wc = jnp.transpose(jnp.flip(wt, axis=(2, 3)), (1, 0, 2, 3))      # (Cout, Cin, 3, 3)
    y = jax.lax.conv_general_dilated(
        x, wc, window_strides=(1, 1), padding='SAME',
        dimension_numbers=('NCHW', 'OIHW', 'NCHW'))
    y = y + bt[None, :, None, None]
    y = (y - mean[None, :, None, None]) * (gamma[None, :, None, None]
                                           / jnp.sqrt(var[None, :, None, None] + eps))
    y = y + beta[None, :, None, None]
    return jnp.maximum(y, 0.0)


if __name__ == "__main__":
    N, Cin, Cout, H, W = 2, 4, 4, 16, 16
    key = jax.random.PRNGKey(0)
    kx, kw, kb, kg, kbe, km, kv = jax.random.split(key, 7)

    x = jax.random.normal(kx, (N, Cin, H, W), jnp.float32)
    # ConvTranspose2d(Cin, Cout, 3, stride=1, padding=1) params (PyTorch layout).
    wt = jax.random.normal(kw, (Cin, Cout, 3, 3), jnp.float32) * 0.1
    bt = jax.random.normal(kb, (Cout,), jnp.float32) * 0.1
    # BatchNorm2d(Cout) eval-mode parameters / running statistics.
    gamma = 1.0 + 0.1 * jax.random.normal(kg, (Cout,), jnp.float32)
    beta = 0.1 * jax.random.normal(kbe, (Cout,), jnp.float32)
    mean = 0.1 * jax.random.normal(km, (Cout,), jnp.float32)
    var = jnp.abs(jax.random.normal(kv, (Cout,), jnp.float32)) + 0.5

    ref = jax.block_until_ready(_ref_decoder_block(x, wt, bt, gamma, beta, mean, var))

    # Auto tile (whole image per step) and an explicit 2-tile run (exercises the halo path).
    out = jax.block_until_ready(
        decoder_block_forward(x, wt, bt, gamma, beta, mean, var))
    out_tiled = jax.block_until_ready(
        decoder_block_forward(x, wt, bt, gamma, beta, mean, var, h_tile=8))

    assert out.shape == (N, Cout, H, W)
    err = float(jnp.max(jnp.abs(out - ref)))
    err_t = float(jnp.max(jnp.abs(out_tiled - ref)))
    # bf16 matmul operands (f32 accumulation) vs an all-f32 reference.
    assert jnp.allclose(out, ref, atol=5e-2, rtol=5e-2), f"mismatch, max |err|={err}"
    assert jnp.allclose(out_tiled, ref, atol=5e-2, rtol=5e-2), f"tiled mismatch, max |err|={err_t}"
    print("KERNEL_OK")
</pallas_src>

<mosaic_0001>
module attributes {stable_mosaic.version = 11 : i64} {
  func.func @_decoder_block_kernel(%arg0: i32, %arg1: i32, %arg2: memref<1x4x128xf32, #tpu.memory_space<vmem>>, %arg3: memref<1x4x256xf32, #tpu.memory_space<vmem>>, %arg4: memref<1x4x128xf32, #tpu.memory_space<vmem>>, %arg5: memref<4x36xbf16, #tpu.memory_space<vmem>>, %arg6: memref<4x1xf32, #tpu.memory_space<vmem>>, %arg7: memref<2x256xbf16, #tpu.memory_space<vmem>>, %arg8: memref<1x4x256xf32, #tpu.memory_space<vmem>>) attributes {dimension_semantics = [#tpu.dimension_semantics<parallel>, #tpu.dimension_semantics<parallel>], iteration_bounds = array<i64: 2, 1>, scalar_prefetch = 0 : i64, scratch_operands = 0 : i64, tpu.core_type = #tpu.core_type<tc>, window_params = [{transform_indices = @transform_0, window_bounds = array<i64: 1, 4, 128>}, {transform_indices = @transform_1, window_bounds = array<i64: 1, 4, 256>}, {transform_indices = @transform_2, window_bounds = array<i64: 1, 4, 128>}, {pipeline_mode = #tpu.pipeline_mode<synchronous>, transform_indices = @transform_3, window_bounds = array<i64: 4, 36>}, {pipeline_mode = #tpu.pipeline_mode<synchronous>, transform_indices = @transform_4, window_bounds = array<i64: 4, 1>}, {pipeline_mode = #tpu.pipeline_mode<synchronous>, transform_indices = @transform_5, window_bounds = array<i64: 2, 256>}, {transform_indices = @transform_6, window_bounds = array<i64: 1, 4, 256>}]} {
    %c0 = arith.constant 0 : index
    %c0_0 = arith.constant 0 : index
    %c0_1 = arith.constant 0 : index
    %0 = vector.load %arg3[%c0, %c0_0, %c0_1] : memref<1x4x256xf32, #tpu.memory_space<vmem>>, vector<1x4x256xf32>
    %1 = vector.shape_cast %0 : vector<1x4x256xf32> to vector<4x256xf32>
    %2 = arith.truncf %1 : vector<4x256xf32> to vector<4x256xbf16>
    %c0_i32 = arith.constant 0 : i32
    %3 = arith.cmpi sgt, %arg1, %c0_i32 : i32
    %cst = arith.constant 1.000000e+00 : f32
    %cst_2 = arith.constant 0.000000e+00 : f32
    %4 = arith.select %3, %cst, %cst_2 : f32
    %5 = arith.truncf %4 : f32 to bf16
    %c0_i32_3 = arith.constant 0 : i32
    %6 = arith.cmpi slt, %arg1, %c0_i32_3 : i32
    %cst_4 = arith.constant 1.000000e+00 : f32
    %cst_5 = arith.constant 0.000000e+00 : f32
    %7 = arith.select %6, %cst_4, %cst_5 : f32
    %8 = arith.truncf %7 : f32 to bf16
    %c0_6 = arith.constant 0 : index
    %c0_7 = arith.constant 0 : index
    %c112 = arith.constant 112 : index
    %9 = vector.load %arg2[%c0_6, %c0_7, %c112] : memref<1x4x128xf32, #tpu.memory_space<vmem>>, vector<1x4x16xf32>
    %10 = vector.shape_cast %9 : vector<1x4x16xf32> to vector<4x16xf32>
    %11 = arith.truncf %10 : vector<4x16xf32> to vector<4x16xbf16>
    %12 = vector.broadcast %5 : bf16 to vector<4x16xbf16>
    %13 = arith.mulf %11, %12 : vector<4x16xbf16>
    %c0_8 = arith.constant 0 : index
    %c0_9 = arith.constant 0 : index
    %c0_10 = arith.constant 0 : index
    %14 = vector.load %arg4[%c0_8, %c0_9, %c0_10] : memref<1x4x128xf32, #tpu.memory_space<vmem>>, vector<1x4x16xf32>
    %15 = vector.shape_cast %14 : vector<1x4x16xf32> to vector<4x16xf32>
    %16 = arith.truncf %15 : vector<4x16xf32> to vector<4x16xbf16>
    %17 = vector.broadcast %8 : bf16 to vector<4x16xbf16>
    %18 = arith.mulf %16, %17 : vector<4x16xbf16>
    %cst_11 = arith.constant 0.000000e+00 : bf16
    %19 = vector.broadcast %cst_11 : bf16 to vector<4x1xbf16>
    %20 = tpu.concatenate %19, %13, %2, %18, %19 in 1 : vector<4x1xbf16>, vector<4x16xbf16>, vector<4x256xbf16>, vector<4x16xbf16>, vector<4x1xbf16> -> vector<4x290xbf16>
    %c0_12 = arith.constant 0 : index
    %c0_13 = arith.constant 0 : index
    %21 = vector.load %arg7[%c0_12, %c0_13] : memref<2x256xbf16, #tpu.memory_space<vmem>>, vector<1x256xbf16>
    %c1 = arith.constant 1 : index
    %c0_14 = arith.constant 0 : index
    %22 = vector.load %arg7[%c1, %c0_14] : memref<2x256xbf16, #tpu.memory_space<vmem>>, vector<1x256xbf16>
    %23 = vector.extract_strided_slice %20 {offsets = [0, 0], sizes = [4, 256], strides = [1, 1]} : vector<4x290xbf16> to vector<4x256xbf16>
    %24 = vector.broadcast %21 : vector<1x256xbf16> to vector<4x256xbf16>
    %25 = arith.mulf %23, %24 : vector<4x256xbf16>
    %26 = vector.extract_strided_slice %20 {offsets = [0, 1], sizes = [4, 256], strides = [1, 1]} : vector<4x290xbf16> to vector<4x256xbf16>
    %27 = vector.extract_strided_slice %20 {offsets = [0, 2], sizes = [4, 256], strides = [1, 1]} : vector<4x290xbf16> to vector<4x256xbf16>
    %28 = vector.broadcast %22 : vector<1x256xbf16> to vector<4x256xbf16>
    %29 = arith.mulf %27, %28 : vector<4x256xbf16>
    %30 = vector.extract_strided_slice %20 {offsets = [0, 16], sizes = [4, 256], strides = [1, 1]} : vector<4x290xbf16> to vector<4x256xbf16>
    %31 = vector.broadcast %21 : vector<1x256xbf16> to vector<4x256xbf16>
    %32 = arith.mulf %30, %31 : vector<4x256xbf16>
    %33 = vector.extract_strided_slice %20 {offsets = [0, 17], sizes = [4, 256], strides = [1, 1]} : vector<4x290xbf16> to vector<4x256xbf16>
    %34 = vector.extract_strided_slice %20 {offsets = [0, 18], sizes = [4, 256], strides = [1, 1]} : vector<4x290xbf16> to vector<4x256xbf16>
    %35 = vector.broadcast %22 : vector<1x256xbf16> to vector<4x256xbf16>
    %36 = arith.mulf %34, %35 : vector<4x256xbf16>
    %37 = vector.extract_strided_slice %20 {offsets = [0, 32], sizes = [4, 256], strides = [1, 1]} : vector<4x290xbf16> to vector<4x256xbf16>
    %38 = vector.broadcast %21 : vector<1x256xbf16> to vector<4x256xbf16>
    %39 = arith.mulf %37, %38 : vector<4x256xbf16>
    %40 = vector.extract_strided_slice %20 {offsets = [0, 33], sizes = [4, 256], strides = [1, 1]} : vector<4x290xbf16> to vector<4x256xbf16>
    %41 = vector.extract_strided_slice %20 {offsets = [0, 34], sizes = [4, 256], strides = [1, 1]} : vector<4x290xbf16> to vector<4x256xbf16>
    %42 = vector.broadcast %22 : vector<1x256xbf16> to vector<4x256xbf16>
    %43 = arith.mulf %41, %42 : vector<4x256xbf16>
    %44 = tpu.concatenate %25, %26, %29, %32, %33, %36, %39, %40, %43 in 0 : vector<4x256xbf16>, vector<4x256xbf16>, vector<4x256xbf16>, vector<4x256xbf16>, vector<4x256xbf16>, vector<4x256xbf16>, vector<4x256xbf16>, vector<4x256xbf16>, vector<4x256xbf16> -> vector<36x256xbf16>
    %c0_15 = arith.constant 0 : index
    %c0_16 = arith.constant 0 : index
    %45 = vector.load %arg5[%c0_15, %c0_16] : memref<4x36xbf16, #tpu.memory_space<vmem>>, vector<4x36xbf16>
    %cst_17 = arith.constant dense<0.000000e+00> : vector<4x256xf32>
    %46 = tpu.matmul %45, %44, %cst_17 {dimension_numbers = #tpu.dot_dimension_numbers<[1], [0], [0], [1], [0, 0, 1, 1], [], []>} : vector<4x36xbf16>, vector<36x256xbf16>, vector<4x256xf32> -> vector<4x256xf32>
    %c0_18 = arith.constant 0 : index
    %c0_19 = arith.constant 0 : index
    %47 = vector.load %arg6[%c0_18, %c0_19] : memref<4x1xf32, #tpu.memory_space<vmem>>, vector<4x1xf32>
    %48 = vector.broadcast %47 : vector<4x1xf32> to vector<4x256xf32>
    %49 = arith.addf %46, %48 : vector<4x256xf32>
    %cst_20 = arith.constant 0.000000e+00 : f32
    %50 = vector.broadcast %cst_20 : f32 to vector<4x256xf32>
    %51 = arith.maximumf %49, %50 : vector<4x256xf32>
    %c0_21 = arith.constant 0 : index
    %c0_22 = arith.constant 0 : index
    %c0_23 = arith.constant 0 : index
    %52 = vector.load %arg8[%c0_21, %c0_22, %c0_23] : memref<1x4x256xf32, #tpu.memory_space<vmem>>, vector<1x4x256xf32>
    %53 = vector.shape_cast %52 : vector<1x4x256xf32> to vector<4x256xf32>
    %54 = vector.shape_cast %51 : vector<4x256xf32> to vector<1x4x256xf32>
    tpu.vector_store %arg8[%c0_21, %c0_22, %c0_23], %54 {strides = array<i32>} : memref<1x4x256xf32, #tpu.memory_space<vmem>>, vector<1x4x256xf32>,
    return
  }
  func.func @transform_0(%arg0: i32, %arg1: i32) -> (i32, i32, i32) {
    %c2_i32 = arith.constant 2 : i32
    %0 = arith.muli %arg1, %c2_i32 : i32
    %c1_i32 = arith.constant 1 : i32
    %1 = arith.subi %0, %c1_i32 : i32
    %c0_i32 = arith.constant 0 : i32
    %2 = arith.maxsi %1, %c0_i32 : i32
    %c0_i32_0 = arith.constant 0 : i32
    %c0_i32_1 = arith.constant 0 : i32
    return %arg0, %c0_i32_0, %2 : i32, i32, i32
  }
  func.func @transform_1(%arg0: i32, %arg1: i32) -> (i32, i32, i32) {
    %c0_i32 = arith.constant 0 : i32
    %c0_i32_0 = arith.constant 0 : i32
    return %arg0, %c0_i32, %arg1 : i32, i32, i32
  }
  func.func @transform_2(%arg0: i32, %arg1: i32) -> (i32, i32, i32) {
    %c1_i32 = arith.constant 1 : i32
    %0 = arith.addi %arg1, %c1_i32 : i32
    %c2_i32 = arith.constant 2 : i32
    %1 = arith.muli %0, %c2_i32 : i32
    %c1_i32_0 = arith.constant 1 : i32
    %2 = arith.minsi %1, %c1_i32_0 : i32
    %c0_i32 = arith.constant 0 : i32
    %c0_i32_1 = arith.constant 0 : i32
    return %arg0, %c0_i32, %2 : i32, i32, i32
  }
  func.func @transform_3(%arg0: i32, %arg1: i32) -> (i32, i32) {
    %c0_i32 = arith.constant 0 : i32
    %c0_i32_0 = arith.constant 0 : i32
    %c0_i32_1 = arith.constant 0 : i32
    return %c0_i32, %c0_i32_0 : i32, i32
  }
  func.func @transform_4(%arg0: i32, %arg1: i32) -> (i32, i32) {
    %c0_i32 = arith.constant 0 : i32
    %c0_i32_0 = arith.constant 0 : i32
    %c0_i32_1 = arith.constant 0 : i32
    return %c0_i32, %c0_i32_0 : i32, i32
  }
  func.func @transform_5(%arg0: i32, %arg1: i32) -> (i32, i32) {
    %c0_i32 = arith.constant 0 : i32
    %c0_i32_0 = arith.constant 0 : i32
    %c0_i32_1 = arith.constant 0 : i32
    return %c0_i32, %c0_i32_0 : i32, i32
  }
  func.func @transform_6(%arg0: i32, %arg1: i32) -> (i32, i32, i32) {
    %c0_i32 = arith.constant 0 : i32
    %c0_i32_0 = arith.constant 0 : i32
    return %arg0, %c0_i32, %arg1 : i32, i32, i32
  }
}

</mosaic_0001>

<llo_original>
// kernel: decoder_block_forward.1
$region0: #{decoder_block_forward.1}
  #allocation0 [shape = 'u32[]', space=smem, size = 0x4, offset = 0x4, fixed_abs, tag = 'smem constant byte address 0x4 - core index']
  #allocation1 [shape = 'u32[144,128]{1,0:T(1,128)}', space=vmem, size = 0x12000, scoped, tag = 'internal scratch']
  %s0 = inlined_call_operand.vmem [shape: f32[2,4,256], index: 0, kind: input, shape index: {}, may-alias: {0,1,2}]
  %s1 = inlined_call_operand.vmem [shape: f32[2,4,256], index: 1, kind: input, shape index: {}, may-alias: {0,1,2}]
  %s2 = inlined_call_operand.vmem [shape: f32[2,4,256], index: 2, kind: input, shape index: {}, may-alias: {0,1,2}]
  %s3 = inlined_call_operand.vmem [shape: bf16[4,36], index: 3, kind: input, shape index: {}]
  %s4 = inlined_call_operand.vmem [shape: f32[4,1], index: 4, kind: input, shape index: {}]
  %s5 = inlined_call_operand.vmem [shape: bf16[2,256], index: 5, kind: input, shape index: {}]
  %s6 = inlined_call_operand.vmem [shape: f32[2,4,256], index: 6, kind: output, shape index: {}]
  %s7 = sld [smem:[#allocation0]]
  $region57: #{decoder_block_forward.1} parent=0
    _
  %s9 = ssub.s32 1, %s7
  %s10 = scalar_select 0, %s9, %s7
  loop: start=0, step=1, limit=4
  $region2: #{decoder_block_forward.1} parent=0 // loop_pre_header
    _
  $region3: #{decoder_block_forward.1} parent=0 // loop_header
    %s12 = sphi 0, %s16
    %p13 = scmp.ge.s32.totalorder %s12, 4
    %s19 = sphi 0, %s31
    %s20 = sphi 0, %s27
    %s21 = sphi 0, %s19
    %s22 = sphi 0, %s20
    %s23 = sphi 0, %s21
    %s24 = sphi 0, %s22
    %s44 = sphi 0, %s46
    %s47 = sphi 0, %s44
    %s48 = sphi 0, %s47
    %s64 = sphi 0, %s48
    %s72 = sphi 0, %s74
    %s75 = sphi 0, %s72
    %s76 = sphi 0, %s75
    %s92 = sphi 0, %s76
    %s108 = sphi 0, %s110
    %s111 = sphi 0, %s108
    %s112 = sphi 0, %s111
    %s128 = sphi 0, %s112
    %s132 = sphi 0, %s132
    %s134 = sphi 0, %s132
    %s135 = sphi 0, %s134
    %s149 = sphi 0, %s135
    %s153 = sphi 0, %s153
    %s155 = sphi 0, %s153
    %s156 = sphi 0, %s155
    %s170 = sphi 0, %s156
    %s174 = sphi 0, %s174
    %s176 = sphi 0, %s174
    %s177 = sphi 0, %s176
    %s191 = sphi 0, %s177
    %s199 = sphi 0, %s201
    %s202 = sphi 0, %s199
    %s203 = sphi 0, %s202
    %s219 = sphi 0, %s203
  $region4: #{decoder_block_forward.1} parent=0 // loop_header_branch
    %15 = sbr.rel (%p13) target = $region8
  $region5: #{decoder_block_forward.1} parent=0 // loop_body
    %s17 = ssub.s32 %s12, 1
    %s18 = ssub.s32 %s12, 2
    %s25 = sadd.s32 1, %s20
    %p26 = scmp.ge.s32.totalorder %s25, 1
    %s27 = scalar_select %p26, 0, %s25
    %s28 = sadd.s32 1, %s19
    %s29 = scalar_select %p26, %s28, %s19
    %p30 = scmp.ge.s32.totalorder %s29, 2
    %s31 = scalar_select %p30, 0, %s29
    %s32 = smul.u32 %s20, 2
    %s33 = ssub.s32 %s32, 1
    %p34 = scmp.gt.s32.totalorder %s33, 0
    %s35 = scalar_select %p34, %s33, 0
    %s36 = smul.u32 %s27, 2
    %s37 = ssub.s32 %s36, 1
    %p38 = scmp.gt.s32.totalorder %s37, 0
    %s39 = scalar_select %p38, %s37, 0
    %s40 = ssub.s32 %s19, %s31
    %s41 = ssub.s32 %s35, %s39
    %s42 = sor.u32 %s40, %s41
    %p43 = scmp.eq.s32.totalorder %s42, 0
    %s45 = sadd.s32 %s44, 1
    %s46 = scalar_select %p43, %s44, %s45
    %p49 = pneg %p43
    %p50 = scmp.eq.s32.totalorder %s12, 1
    %p51 = por %p49, %p50
    %p52 = scmp.ne.s32.totalorder %s44, %s47
    %p53 = scmp.eq.s32.totalorder %s12, 0
    %p54 = por %p52, %p53
    %p55 = scmp.ne.s32.totalorder %s44, %s47
    %p56 = scmp.eq.s32.totalorder %s17, 1
    %p57 = por %p55, %p56
    %p58 = scmp.ne.s32.totalorder %s47, %s48
    %p59 = scmp.eq.s32.totalorder %s17, 0
    %p60 = por %p58, %p59
    %p61 = scmp.ne.s32.totalorder %s47, %s48
    %p62 = scmp.eq.s32.totalorder %s18, 1
    %p63 = por %p61, %p62
    %p65 = scmp.ne.s32.totalorder %s48, %s64
    %p66 = scmp.eq.s32.totalorder %s18, 0
    %p67 = por %p65, %p66
    %s68 = ssub.s32 %s19, %s31
    %s69 = ssub.s32 %s20, %s27
    %s70 = sor.u32 %s68, %s69
    %p71 = scmp.eq.s32.totalorder %s70, 0
    %s73 = sadd.s32 %s72, 1
    %s74 = scalar_select %p71, %s72, %s73
    %p77 = pneg %p71
    %p78 = scmp.eq.s32.totalorder %s12, 1
    %p79 = por %p77, %p78
    %p80 = scmp.ne.s32.totalorder %s72, %s75
    %p81 = scmp.eq.s32.totalorder %s12, 0
    %p82 = por %p80, %p81
    %p83 = scmp.ne.s32.totalorder %s72, %s75
    %p84 = scmp.eq.s32.totalorder %s17, 1
    %p85 = por %p83, %p84
    %p86 = scmp.ne.s32.totalorder %s75, %s76
    %p87 = scmp.eq.s32.totalorder %s17, 0
    %p88 = por %p86, %p87
    %p89 = scmp.ne.s32.totalorder %s75, %s76
    %p90 = scmp.eq.s32.totalorder %s18, 1
    %p91 = por %p89, %p90
    %p93 = scmp.ne.s32.totalorder %s76, %s92
    %p94 = scmp.eq.s32.totalorder %s18, 0
    %p95 = por %p93, %p94
    %s96 = sadd.s32 %s20, 1
    %s97 = smul.u32 %s96, 2
    %p98 = scmp.lt.s32.totalorder %s97, 1
    %s99 = scalar_select %p98, %s97, 1
    %s100 = sadd.s32 %s27, 1
    %s101 = smul.u32 %s100, 2
    %p102 = scmp.lt.s32.totalorder %s101, 1
    %s103 = scalar_select %p102, %s101, 1
    %s104 = ssub.s32 %s19, %s31
    %s105 = ssub.s32 %s99, %s103
    %s106 = sor.u32 %s104, %s105
    %p107 = scmp.eq.s32.totalorder %s106, 0
    %s109 = sadd.s32 %s108, 1
    %s110 = scalar_select %p107, %s108, %s109
    %p113 = pneg %p107
    %p114 = scmp.eq.s32.totalorder %s12, 1
    %p115 = por %p113, %p114
    %p116 = scmp.ne.s32.totalorder %s108, %s111
    %p117 = scmp.eq.s32.totalorder %s12, 0
    %p118 = por %p116, %p117
    %p119 = scmp.ne.s32.totalorder %s108, %s111
    %p120 = scmp.eq.s32.totalorder %s17, 1
    %p121 = por %p119, %p120
    %p122 = scmp.ne.s32.totalorder %s111, %s112
    %p123 = scmp.eq.s32.totalorder %s17, 0
    %p124 = por %p122, %p123
    %p125 = scmp.ne.s32.totalorder %s111, %s112
    %p126 = scmp.eq.s32.totalorder %s18, 1
    %p127 = por %p125, %p126
    %p129 = scmp.ne.s32.totalorder %s112, %s128
    %p130 = scmp.eq.s32.totalorder %s18, 0
    %p131 = por %p129, %p130
    %s133 = sadd.s32 %s132, 1
    %p136 = scmp.eq.s32.totalorder %s12, 1
    %p137 = scmp.ne.s32.totalorder %s132, %s134
    %p138 = scmp.eq.s32.totalorder %s12, 0
    %p139 = por %p137, %p138
    %p140 = scmp.ne.s32.totalorder %s132, %s134
    %p141 = scmp.eq.s32.totalorder %s17, 1
    %p142 = por %p140, %p141
    %p143 = scmp.ne.s32.totalorder %s134, %s135
    %p144 = scmp.eq.s32.totalorder %s17, 0
    %p145 = por %p143, %p144
    %p146 = scmp.ne.s32.totalorder %s134, %s135
    %p147 = scmp.eq.s32.totalorder %s18, 1
    %p148 = por %p146, %p147
    %p150 = scmp.ne.s32.totalorder %s135, %s149
    %p151 = scmp.eq.s32.totalorder %s18, 0
    %p152 = por %p150, %p151
    %s154 = sadd.s32 %s153, 1
    %p157 = scmp.eq.s32.totalorder %s12, 1
    %p158 = scmp.ne.s32.totalorder %s153, %s155
    %p159 = scmp.eq.s32.totalorder %s12, 0
    %p160 = por %p158, %p159
    %p161 = scmp.ne.s32.totalorder %s153, %s155
    %p162 = scmp.eq.s32.totalorder %s17, 1
    %p163 = por %p161, %p162
    %p164 = scmp.ne.s32.totalorder %s155, %s156
    %p165 = scmp.eq.s32.totalorder %s17, 0
    %p166 = por %p164, %p165
    %p167 = scmp.ne.s32.totalorder %s155, %s156
    %p168 = scmp.eq.s32.totalorder %s18, 1
    %p169 = por %p167, %p168
    %p171 = scmp.ne.s32.totalorder %s156, %s170
    %p172 = scmp.eq.s32.totalorder %s18, 0
    %p173 = por %p171, %p172
    %s175 = sadd.s32 %s174, 1
    %p178 = scmp.eq.s32.totalorder %s12, 1
    %p179 = scmp.ne.s32.totalorder %s174, %s176
    %p180 = scmp.eq.s32.totalorder %s12, 0
    %p181 = por %p179, %p180
    %p182 = scmp.ne.s32.totalorder %s174, %s176
    %p183 = scmp.eq.s32.totalorder %s17, 1
    %p184 = por %p182, %p183
    %p185 = scmp.ne.s32.totalorder %s176, %s177
    %p186 = scmp.eq.s32.totalorder %s17, 0
    %p187 = por %p185, %p186
    %p188 = scmp.ne.s32.totalorder %s176, %s177
    %p189 = scmp.eq.s32.totalorder %s18, 1
    %p190 = por %p188, %p189
    %p192 = scmp.ne.s32.totalorder %s177, %s191
    %p193 = scmp.eq.s32.totalorder %s18, 0
    %p194 = por %p192, %p193
    %s195 = ssub.s32 %s19, %s31
    %s196 = ssub.s32 %s20, %s27
    %s197 = sor.u32 %s195, %s196
    %p198 = scmp.eq.s32.totalorder %s197, 0
    %s200 = sadd.s32 %s199, 1
    %s201 = scalar_select %p198, %s199, %s200
    %p204 = pneg %p198
    %p205 = scmp.eq.s32.totalorder %s12, 1
    %p206 = por %p204, %p205
    %p207 = scmp.ne.s32.totalorder %s199, %s202
    %p208 = scmp.eq.s32.totalorder %s12, 0
    %p209 = por %p207, %p208
    %p210 = scmp.ne.s32.totalorder %s199, %s202
    %p211 = scmp.eq.s32.totalorder %s17, 1
    %p212 = por %p210, %p211
    %p213 = scmp.ne.s32.totalorder %s202, %s203
    %p214 = scmp.eq.s32.totalorder %s17, 0
    %p215 = por %p213, %p214
    %p216 = scmp.ne.s32.totalorder %s202, %s203
    %p217 = scmp.eq.s32.totalorder %s18, 1
    %p218 = por %p216, %p217
    %p220 = scmp.ne.s32.totalorder %s203, %s219
    %p221 = scmp.eq.s32.totalorder %s18, 0
    %p222 = por %p220, %p221
    %p223 = scmp.le.s32.totalorder 1, %s12
    %p224 = scmp.lt.s32.totalorder %s12, 3
    %p225 = pnand %p223, %p224
    %p226 = pneg %p225
    // Predicated region
    $region9: #{decoder_block_forward.1} parent=5 // pred_check
      _
    $region10: #{decoder_block_forward.1} parent=5 // pred_check_branch
      %228 = sbr.rel (%p225) target = $region12
    $region11: #{decoder_block_forward.1} parent=5 // pred_region
      %s229 = ssub.s32 %s12, 1
      // Predicated region
      $region13: #{decoder_block_forward.1} parent=11 // pred_check
        %p230 = pneg %p145
      $region14: #{decoder_block_forward.1} parent=11 // pred_check_branch
        %232 = sbr.rel (%p230) target = $region16
      $region15: #{decoder_block_forward.1} parent=11 // pred_region
        _
      $region16: #{decoder_block_forward.1} parent=11 // pred_fallthru
        _
      // Predicated region
      $region17: #{decoder_block_forward.1} parent=11 // pred_check
        %p233 = pneg %p166
      $region18: #{decoder_block_forward.1} parent=11 // pred_check_branch
        %235 = sbr.rel (%p233) target = $region20
      $region19: #{decoder_block_forward.1} parent=11 // pred_region
        _
      $region20: #{decoder_block_forward.1} parent=11 // pred_fallthru
        _
      // Predicated region
      $region21: #{decoder_block_forward.1} parent=11 // pred_check
        %p236 = pneg %p187
      $region22: #{decoder_block_forward.1} parent=11 // pred_check_branch
        %238 = sbr.rel (%p236) target = $region24
      $region23: #{decoder_block_forward.1} parent=11 // pred_region
        _
      $region24: #{decoder_block_forward.1} parent=11 // pred_fallthru
        _
    $region12: #{decoder_block_forward.1} parent=5 // pred_fallthru
      _
    %p239 = scmp.lt.s32.totalorder %s12, 2
    // Predicated region
    $region25: #{decoder_block_forward.1} parent=5 // pred_check
      %p240 = pneg %p239
    $region26: #{decoder_block_forward.1} parent=5 // pred_check_branch
      %242 = sbr.rel (%p240) target = $region28
    $region27: #{decoder_block_forward.1} parent=5 // pred_region
      // Predicated region
      $region29: #{decoder_block_forward.1} parent=27 // pred_check
        %p243 = pneg %p54
      $region30: #{decoder_block_forward.1} parent=27 // pred_check_branch
        %245 = sbr.rel (%p243) target = $region32
      $region31: #{decoder_block_forward.1} parent=27 // pred_region
        %s246 = smul.u32 %s20, 2
        %s247 = ssub.s32 %s246, 1
        %p248 = scmp.gt.s32.totalorder %s247, 0
        %s249 = scalar_select %p248, %s247, 0
        %p250 = scmp.lt.s32.totalorder %s19, 1
        %s251 = scalar_select %p250, %s19, 1
        %p252 = scmp.lt.s32.totalorder %s249, 1
        %s253 = scalar_select %p252, %s249, 1
        %s254 = smul.addr %s251, 2
        %s255 = sadd.s32 %s253, %s254
        %s256 = smul.addr %s255, 4
        %s257 = scalar_lea.vmem %s0, %s256
        %s258 = smul.u32 %s20, 2
        %s259 = ssub.s32 %s258, 1
        %p260 = scmp.gt.s32.totalorder %s259, 0
        %s261 = scalar_select %p260, %s259, 0
      $region32: #{decoder_block_forward.1} parent=27 // pred_fallthru
        _
      // Predicated region
      $region33: #{decoder_block_forward.1} parent=27 // pred_check
        %p262 = pneg %p82
      $region34: #{decoder_block_forward.1} parent=27 // pred_check_branch
        %264 = sbr.rel (%p262) target = $region36
      $region35: #{decoder_block_forward.1} parent=27 // pred_region
        %s265 = smul.u32 2, %s20
        %p266 = scmp.lt.s32.totalorder %s19, 1
        %s267 = scalar_select %p266, %s19, 1
        %p268 = scmp.lt.s32.totalorder %s265, 1
        %s269 = scalar_select %p268, %s265, 1
        %s270 = smul.addr %s267, 2
        %s271 = sadd.s32 %s269, %s270
        %s272 = smul.addr %s271, 4
        %s273 = scalar_lea.vmem %s1, %s272
        %s274 = smul.u32 2, %s20
      $region36: #{decoder_block_forward.1} parent=27 // pred_fallthru
        _
      // Predicated region
      $region37: #{decoder_block_forward.1} parent=27 // pred_check
        %p275 = pneg %p118
      $region38: #{decoder_block_forward.1} parent=27 // pred_check_branch
        %277 = sbr.rel (%p275) target = $region40
      $region39: #{decoder_block_forward.1} parent=27 // pred_region
        %s278 = sadd.s32 %s20, 1
        %s279 = smul.u32 %s278, 2
        %p280 = scmp.lt.s32.totalorder %s279, 1
        %s281 = scalar_select %p280, %s279, 1
        %p282 = scmp.lt.s32.totalorder %s19, 1
        %s283 = scalar_select %p282, %s19, 1
        %p284 = scmp.lt.s32.totalorder %s281, 1
        %s285 = scalar_select %p284, %s281, 1
        %s286 = smul.addr %s283, 2
        %s287 = sadd.s32 %s285, %s286
        %s288 = smul.addr %s287, 4
        %s289 = scalar_lea.vmem %s2, %s288
        %s290 = sadd.s32 %s20, 1
        %s291 = smul.u32 %s290, 2
        %p292 = scmp.lt.s32.totalorder %s291, 1
        %s293 = scalar_select %p292, %s291, 1
      $region40: #{decoder_block_forward.1} parent=27 // pred_fallthru
        _
    $region28: #{decoder_block_forward.1} parent=5 // pred_fallthru
      _
    %p294 = scmp.le.s32.totalorder 1, %s12
    %p295 = scmp.lt.s32.totalorder %s12, 3
    %p296 = pnand %p294, %p295
    %p297 = pneg %p296
    // Predicated region
    $region41: #{decoder_block_forward.1} parent=5 // pred_check
      _
    $region42: #{decoder_block_forward.1} parent=5 // pred_check_branch
      %299 = sbr.rel (%p296) target = $region44
    $region43: #{decoder_block_forward.1} parent=5 // pred_region
      %s300 = ssub.s32 %s12, 1
      %s301 = smul.u32 %s22, 2
      %s302 = ssub.s32 %s301, 1
      %p303 = scmp.gt.s32.totalorder %s302, 0
      %s304 = scalar_select %p303, %s302, 0
      %p305 = scmp.lt.s32.totalorder %s21, 1
      %s306 = scalar_select %p305, %s21, 1
      %p307 = scmp.lt.s32.totalorder %s304, 1
      %s308 = scalar_select %p307, %s304, 1
      %s309 = smul.addr %s306, 2
      %s310 = sadd.s32 %s308, %s309
      %s311 = smul.addr %s310, 4
      %s312 = scalar_lea.vmem %s0, %s311
      %p313 = pneg %p60
      %p314 = pneg %p57
      %s315 = smul.u32 2, %s22
      %p316 = scmp.lt.s32.totalorder %s21, 1
      %s317 = scalar_select %p316, %s21, 1
      %p318 = scmp.lt.s32.totalorder %s315, 1
      %s319 = scalar_select %p318, %s315, 1
      %s320 = smul.addr %s317, 2
      %s321 = sadd.s32 %s319, %s320
      %s322 = smul.addr %s321, 4
      %s323 = scalar_lea.vmem %s1, %s322
      %p324 = pneg %p88
      %p325 = pneg %p85
      %s326 = sadd.s32 %s22, 1
      %s327 = smul.u32 %s326, 2
      %p328 = scmp.lt.s32.totalorder %s327, 1
      %s329 = scalar_select %p328, %s327, 1
      %p330 = scmp.lt.s32.totalorder %s21, 1
      %s331 = scalar_select %p330, %s21, 1
      %p332 = scmp.lt.s32.totalorder %s329, 1
      %s333 = scalar_select %p332, %s329, 1
      %s334 = smul.addr %s331, 2
      %s335 = sadd.s32 %s333, %s334
      %s336 = smul.addr %s335, 4
      %s337 = scalar_lea.vmem %s2, %s336
      %p338 = pneg %p124
      %p339 = pneg %p121
      %p340 = pneg %p145
      %p341 = pneg %p142
      %p342 = pneg %p166
      %p343 = pneg %p163
      %p344 = pneg %p187
      %p345 = pneg %p184
      %p346 = pneg %p215
      %p347 = pneg %p212
      %s348 = smul.u32 2, %s22
      %p349 = scmp.lt.s32.totalorder %s21, 1
      %s350 = scalar_select %p349, %s21, 1
      %p351 = scmp.lt.s32.totalorder %s348, 1
      %s352 = scalar_select %p351, %s348, 1
      %s353 = smul.addr %s350, 2
      %s354 = sadd.s32 %s352, %s353
      %s355 = smul.addr %s354, 4
      %s356 = scalar_lea.vmem %s6, %s355
      %s357 = smul.u32 %s22, 2
      %s358 = ssub.s32 %s357, 1
      %p359 = scmp.gt.s32.totalorder %s358, 0
      %s360 = scalar_select %p359, %s358, 0
      %p361 = scmp.lt.s32.totalorder %s21, 1
      %s362 = scalar_select %p361, %s21, 1
      %p363 = scmp.lt.s32.totalorder %s360, 1
      %s364 = scalar_select %p363, %s360, 1
      %s365 = smul.addr %s362, 2
      %s366 = sadd.s32 %s364, %s365
      %s367 = smul.addr %s366, 4
      %s368 = scalar_lea.vmem %s0, %s367
      %s369 = smul.u32 %s22, 2
      %s370 = ssub.s32 %s369, 1
      %p371 = scmp.gt.s32.totalorder %s370, 0
      %s372 = scalar_select %p371, %s370, 0
      %s373 = smul.u32 2, %s22
      %p374 = scmp.lt.s32.totalorder %s21, 1
      %s375 = scalar_select %p374, %s21, 1
      %p376 = scmp.lt.s32.totalorder %s373, 1
      %s377 = scalar_select %p376, %s373, 1
      %s378 = smul.addr %s375, 2
      %s379 = sadd.s32 %s377, %s378
      %s380 = smul.addr %s379, 4
      %s381 = scalar_lea.vmem %s1, %s380
      %s382 = smul.u32 2, %s22
      %s383 = sadd.s32 %s22, 1
      %s384 = smul.u32 %s383, 2
      %p385 = scmp.lt.s32.totalorder %s384, 1
      %s386 = scalar_select %p385, %s384, 1
      %p387 = scmp.lt.s32.totalorder %s21, 1
      %s388 = scalar_select %p387, %s21, 1
      %p389 = scmp.lt.s32.totalorder %s386, 1
      %s390 = scalar_select %p389, %s386, 1
      %s391 = smul.addr %s388, 2
      %s392 = sadd.s32 %s390, %s391
      %s393 = smul.addr %s392, 4
      %s394 = scalar_lea.vmem %s2, %s393
      %s395 = sadd.s32 %s22, 1
      %s396 = smul.u32 %s395, 2
      %p397 = scmp.lt.s32.totalorder %s396, 1
      %s398 = scalar_select %p397, %s396, 1
      %s399 = smul.u32 2, %s22
      %p400 = scmp.lt.s32.totalorder %s21, 1
      %s401 = scalar_select %p400, %s21, 1
      %p402 = scmp.lt.s32.totalorder %s399, 1
      %s403 = scalar_select %p402, %s399, 1
      %s404 = smul.addr %s401, 2
      %s405 = sadd.s32 %s403, %s404
      %s406 = smul.addr %s405, 4
      %s407 = scalar_lea.vmem %s6, %s406
      %s408 = smul.u32 2, %s22
      %v410 = vld [vmem:[%s381] sm:$0xff]
      %v412 = vcombine.high %v410, %v410
      %v414 = vpack.c.bf16 %v410, %v410
      %v415 = vpack.c.bf16 %v412, %v412
      %p416 = scmp.gt.s32.totalorder %s22, 0
      %s417 = scalar_select %p416, 1.0, 0.0
      %p419 = scmp.ne.f32.partialorder %s417, %s417
      %s420 = sshrl.u32 %s417, 16
      %s421 = sand.u32 %s420, 1
      %s422 = sadd.s32 32767, %s421
      %s423 = sadd.s32 %s417, %s422
      %s424 = sand.u32 %s423, 4294901760
      %s425 = scalar_select %p419, 2143289344, %s424
      %s427 = sshrl.u32 %s425, 16
      %p428 = scmp.lt.s32.totalorder %s22, 0
      %s429 = scalar_select %p428, 1.0, 0.0
      %p431 = scmp.ne.f32.partialorder %s429, %s429
      %s432 = sshrl.u32 %s429, 16
      %s433 = sand.u32 %s432, 1
      %s434 = sadd.s32 32767, %s433
      %s435 = sadd.s32 %s429, %s434
      %s436 = sand.u32 %s435, 4294901760
      %s437 = scalar_select %p431, 2143289344, %s436
      %s439 = sshrl.u32 %s437, 16
      %v440 = vld [vmem:[%s368] sm:$0xf]
      %v441 = vpack.c.bf16 %v440, %v440
      %s442 = sshll.u32 %s427, 16
      %s443 = sor.u32 %s427, %s442
      %v444 = vstv %s443
      %v446 = vmul.bf16 %v441, %v444
      %v447 = vld [vmem:[%s394] sm:$0xf]
      %v448 = vpack.c.bf16 %v447, %v447
      %s449 = sshll.u32 %s439, 16
      %s450 = sor.u32 %s439, %s449
      %v451 = vstv %s450
      %v453 = vmul.bf16 %v448, %v451
      %455 = vrot.lane.b32.xlu0 %v446, 17
      %v456 = vpop.permute.xlu0 %455
      %459 = vrot.lane.b32.xlu0 %v414, 17
      %v460 = vpop.permute.xlu0 %459
      %461 = vrot.lane.b32.xlu0 %v415, 17
      %v462 = vpop.permute.xlu0 %461
      %vm463 = vcmask 138240
      %v464 = vsel %vm463, %v460, %v462
      %467 = vrot.lane.b32.xlu0 %v453, 17
      %v468 = vpop.permute.xlu0 %467
      %vm469 = vcmask 7168
      %v472 = vsel %vm469, 0, %v456
      %vm473 = vcmask 138240
      %v475 = vsel %vm473, %v472, %v460
      %v479 = vsel %vm473, %v462, %v468
      %vm480 = vcmask 269312
      %v481 = vsel %vm480, %v479, 0
      %v483 = vld [vmem:[%s5] sm:$0x3]
      %v486 = vunpack.c.l.s4 1966171168
      %v487 = vunpack.c.0.s8 %v486
      %v488 = vlaneseq
      %v489 = vshrl.u32 %v488, 7
      %v490 = vsub.s32 %v487, %v489
      %v491 = vrot.slane %v483, %v490
      %v492 = vcombine.high %v491, %v491
      %v494 = vunpack.c.l.s4 1966171168
      %v495 = vunpack.c.0.s8 %v494
      %v496 = vlaneseq
      %v497 = vshrl.u32 %v496, 7
      %v498 = vsub.s32 %v495, %v497
      %v499 = vrot.slane %v491, %v498
      %v501 = vunpack.c.l.s4 1966171168
      %v502 = vunpack.c.0.s8 %v501
      %v503 = vlaneseq
      %v504 = vshrl.u32 %v503, 7
      %v505 = vsub.s32 %v502, %v504
      %v506 = vrot.slane %v492, %v505
      %v508 = vpack.i.b16 %v499, %v499
      %v510 = vlaneseq
      %v511 = vshrl.u32 %v510, 7
      %v512 = vsub.s32 0, %v511
      %v513 = vrot.slane %v508, %v512
      %v515 = vpack.i.b16 %v506, %v506
      %v517 = vlaneseq
      %v518 = vshrl.u32 %v517, 7
      %v519 = vsub.s32 0, %v518
      %v520 = vrot.slane %v515, %v519
      %v521 = vmul.bf16 %v475, %v513
      %v522 = vmul.bf16 %v464, %v520
      %v523 = vshrl.u32 %v499, 16
      %v524 = vpack.i.b16 %v523, %v523
      %v526 = vlaneseq
      %v527 = vshrl.u32 %v526, 7
      %v528 = vsub.s32 0, %v527
      %v529 = vrot.slane %v524, %v528
      %v530 = vshrl.u32 %v506, 16
      %v531 = vpack.i.b16 %v530, %v530
      %v533 = vlaneseq
      %v534 = vshrl.u32 %v533, 7
      %v535 = vsub.s32 0, %v534
      %v536 = vrot.slane %v531, %v535
      %539 = vrot.lane.b32.xlu0 %v529, 2
      %v540 = vpop.permute.xlu0 %539
      %541 = vrot.lane.b32.xlu0 %v536, 2
      %v542 = vpop.permute.xlu0 %541
      %vm543 = vcmask 15360
      %v544 = vsel %vm543, %v540, %v542
      %v548 = vmul.bf16 %v475, %v540
      %v549 = vmul.bf16 %v464, %v544
      %v550 = vmul.bf16 %v481, %v542
      %553 = vrot.lane.b32.xlu0 %v513, 16
      %v554 = vpop.permute.xlu0 %553
      %555 = vrot.lane.b32.xlu0 %v520, 16
      %v556 = vpop.permute.xlu0 %555
      %vm557 = vcmask 130048
      %v558 = vsel %vm557, %v554, %v556
      %v562 = vmul.bf16 %v475, %v554
      %v563 = vmul.bf16 %v464, %v558
      %v564 = vmul.bf16 %v481, %v556
      %565 = vrot.lane.b32.xlu0 %v529, 18
      %v566 = vpop.permute.xlu0 %565
      %567 = vrot.lane.b32.xlu0 %v536, 18
      %v568 = vpop.permute.xlu0 %567
      %vm569 = vcmask 146432
      %v570 = vsel %vm569, %v566, %v568
      %v574 = vmul.bf16 %v475, %v566
      %v575 = vmul.bf16 %v464, %v570
      %v576 = vmul.bf16 %v481, %v568
      %577 = vrot.lane.b32.xlu0 %v513, 32
      %v578 = vpop.permute.xlu0 %577
      %579 = vrot.lane.b32.xlu0 %v520, 32
      %v580 = vpop.permute.xlu0 %579
      %vm581 = vcmask 261120
      %v582 = vsel %vm581, %v578, %v580
      %v586 = vmul.bf16 %v475, %v578
      %v587 = vmul.bf16 %v464, %v582
      %v588 = vmul.bf16 %v481, %v580
      %589 = vrot.lane.b32.xlu0 %v529, 34
      %v590 = vpop.permute.xlu0 %589
      %591 = vrot.lane.b32.xlu0 %v536, 34
      %v592 = vpop.permute.xlu0 %591
      %vm593 = vcmask 277504
      %v594 = vsel %vm593, %v590, %v592
      %v598 = vmul.bf16 %v475, %v590
      %v599 = vmul.bf16 %v464, %v594
      %v600 = vmul.bf16 %v481, %v592
      %v603 = vrot.slane %v475, 6
      %v604 = vrot.slane %v464, 6
      %v605 = vrot.slane %v481, 6
      %606 = vrot.lane.b32.xlu0 %v603, 127
      %v607 = vpop.permute.xlu0 %606
      %608 = vrot.lane.b32.xlu0 %v604, 127
      %v609 = vpop.permute.xlu0 %608
      %610 = vrot.lane.b32.xlu0 %v605, 127
      %v611 = vpop.permute.xlu0 %610
      %vm612 = vcmask 1039360
      %v613 = vsel %vm612, %v607, %v609
      %v614 = vsel %vm612, %v609, %v611
      %v618 = vrot.slane %v548, 4
      %v619 = vrot.slane %v549, 4
      %v620 = vrot.slane %v550, 4
      %621 = vrot.lane.b32.xlu0 %v618, 126
      %v622 = vpop.permute.xlu0 %621
      %623 = vrot.lane.b32.xlu0 %v619, 126
      %v624 = vpop.permute.xlu0 %623
      %625 = vrot.lane.b32.xlu0 %v620, 126
      %v626 = vpop.permute.xlu0 %625
      %vm627 = vcmask 1031168
      %v628 = vsel %vm627, %v622, %v624
      %v629 = vsel %vm627, %v624, %v626
      %v633 = vrot.slane %v562, 2
      %v634 = vrot.slane %v563, 2
      %v635 = vrot.slane %v564, 2
      %636 = vrot.lane.b32.xlu0 %v633, 112
      %v637 = vpop.permute.xlu0 %636
      %638 = vrot.lane.b32.xlu0 %v634, 112
      %v639 = vpop.permute.xlu0 %638
      %640 = vrot.lane.b32.xlu0 %v635, 112
      %v641 = vpop.permute.xlu0 %640
      %vm642 = vcmask 916480
      %v643 = vsel %vm642, %v637, %v639
      %v644 = vsel %vm642, %v639, %v641
      %645 = vrot.lane.b32.xlu0 %v475, 111
      %v646 = vpop.permute.xlu0 %645
      %647 = vrot.lane.b32.xlu0 %v464, 111
      %v648 = vpop.permute.xlu0 %647
      %649 = vrot.lane.b32.xlu0 %v481, 111
      %v650 = vpop.permute.xlu0 %649
      %vm651 = vcmask 908288
      %v652 = vsel %vm651, %v646, %v648
      %v653 = vsel %vm651, %v648, %v650
      %v657 = vrot.slane %v574, 6
      %v658 = vrot.slane %v575, 6
      %v659 = vrot.slane %v576, 6
      %660 = vrot.lane.b32.xlu0 %v657, 110
      %v661 = vpop.permute.xlu0 %660
      %662 = vrot.lane.b32.xlu0 %v658, 110
      %v663 = vpop.permute.xlu0 %662
      %664 = vrot.lane.b32.xlu0 %v659, 110
      %v665 = vpop.permute.xlu0 %664
      %vm666 = vcmask 900096
      %v667 = vsel %vm666, %v661, %v663
      %v668 = vsel %vm666, %v663, %v665
      %v672 = vrot.slane %v586, 4
      %v673 = vrot.slane %v587, 4
      %v674 = vrot.slane %v588, 4
      %675 = vrot.lane.b32.xlu0 %v672, 96
      %v676 = vpop.permute.xlu0 %675
      %677 = vrot.lane.b32.xlu0 %v673, 96
      %v678 = vpop.permute.xlu0 %677
      %679 = vrot.lane.b32.xlu0 %v674, 96
      %v680 = vpop.permute.xlu0 %679
      %vm681 = vcmask 785408
      %v682 = vsel %vm681, %v676, %v678
      %v683 = vsel %vm681, %v678, %v680
      %v684 = vrot.slane %v475, 2
      %v685 = vrot.slane %v464, 2
      %v686 = vrot.slane %v481, 2
      %687 = vrot.lane.b32.xlu0 %v684, 95
      %v688 = vpop.permute.xlu0 %687
      %689 = vrot.lane.b32.xlu0 %v685, 95
      %v690 = vpop.permute.xlu0 %689
      %691 = vrot.lane.b32.xlu0 %v686, 95
      %v692 = vpop.permute.xlu0 %691
      %vm693 = vcmask 777216
      %v694 = vsel %vm693, %v688, %v690
      %v695 = vsel %vm693, %v690, %v692
      %699 = vrot.lane.b32.xlu0 %v598, 94
      %v700 = vpop.permute.xlu0 %699
      %701 = vrot.lane.b32.xlu0 %v599, 94
      %v702 = vpop.permute.xlu0 %701
      %703 = vrot.lane.b32.xlu0 %v600, 94
      %v704 = vpop.permute.xlu0 %703
      %vm705 = vcmask 769024
      %v706 = vsel %vm705, %v700, %v702
      %v707 = vsel %vm705, %v702, %v704
      %vm708 = vcmask 1041408
      %v711 = vsel %vm708, %v521, %v613
      %v714 = vsel %vm708, %v522, %v614
      %vm715 = vcmask 1043456
      %v717 = vsel %vm715, %v711, %v628
      %v719 = vsel %vm715, %v714, %v629
      %vm720 = vcmask 1045504
      %v722 = vsel %vm720, %v717, %v643
      %v725 = vsel %vm720, %v719, %v644
      %v729 = vsel %vm708, %v652, %v667
      %v732 = vsel %vm708, %v653, %v668
      %v734 = vsel %vm715, %v729, %v682
      %v736 = vsel %vm715, %v732, %v683
      %v738 = vsel %vm720, %v734, %v694
      %v741 = vsel %vm720, %v736, %v695
      %v743 = vld [vmem:[%s3] sm:$0x3]
      %v744 = vld [vmem:[%s4] sm:$0xf]
      %746 = vset.pattern.permute.xlu0 0
      %747 = vperm.xlu0 %746, %v744
      %v748 = vpop.permute.xlu0 %747
      %vm750 = vcmask 293888
      %v752 = vsel %vm750, %v743, 0
      %v755 = vsel %vm708, %v706, 0
      %v758 = vsel %vm708, %v707, 0
      %760 = vmatprep.subr.bf16.mxu0 %v725
      %761 = vmatpush1.bf16.msra.mxu0 %v722
      %762 = vmatprep.subr.bf16.mxu0 %v741
      %763 = vmatpush1.bf16.msra.mxu0 %v738
      %764 = vmatprep.subr.bf16.mxu0 %v758
      %765 = vmatpush1.bf16.msra.mxu0 %v755
      %766 = vmatprep.subr.bf16.mxu0 0
      %767 = vmatpush1.bf16.msra.mxu0 0
      %768 = vmatprep.subr.bf16.mxu0 0
      %769 = vmatpush1.bf16.msra.mxu0 0
      %770 = vmatprep.subr.bf16.mxu0 0
      %771 = vmatpush1.bf16.msra.mxu0 0
      %772 = vmatprep.subr.bf16.mxu0 0
      %773 = vmatpush1.bf16.msra.mxu0 0
      %774 = vmatprep.subr.bf16.mxu0 0
      %775 = vmatpush1.bf16.msra.mxu0 0
      %776 = vmatprep.subr.bf16.mxu0 0
      %777 = vmatpush1.bf16.msra.mxu0 0
      %778 = vmatprep.subr.bf16.mxu0 0
      %779 = vmatpush1.bf16.msra.mxu0 0
      %780 = vmatprep.subr.bf16.mxu0 0
      %781 = vmatpush1.bf16.msra.mxu0 0
      %782 = vmatprep.subr.bf16.mxu0 0
      %783 = vmatpush1.bf16.msra.mxu0 0
      %784 = vmatprep.subr.bf16.mxu0 0
      %785 = vmatpush1.bf16.msra.mxu0 0
      %786 = vmatprep.subr.bf16.mxu0 0
      %787 = vmatpush1.bf16.msra.mxu0 0
      %788 = vmatprep.subr.bf16.mxu0 0
      %789 = vmatpush1.bf16.msra.mxu0 0
      %790 = vmatprep.subr.bf16.mxu0 0
      %791 = vmatpush1.bf16.msra.mxu0 0
      %792 = vmatprep.mubr.bf16.mxu0 0
      %793 = vmatmul.mubr.bf16.gmra.mrb[0].mxu0 %v752
      %v794 = vpop.f32.mrb[0].mxu0
      %v795 = vadd.f32 %v748, %v794
      %v796 = vpop.f32.mrb[0].mxu0
      %v797 = vadd.f32 %v748, %v796
      %v798 = vpop.f32.mrb[0].mxu0
      %v799 = vpop.f32.mrb[0].mxu0
      %800 = vdwg.mxu0
      %v801 = vmax.f32 %v795, 0.0
      %v802 = vmax.f32 %v797, 0.0
      %v805 = vcombine.low %v801, %v802
      %807 = vst [vmem:[%s407] sm:$0xff] %v805
      %s808 = smul.u32 2, %s22
      %p809 = scmp.lt.s32.totalorder %s21, 1
      %s810 = scalar_select %p809, %s21, 1
      %p811 = scmp.lt.s32.totalorder %s808, 1
      %s812 = scalar_select %p811, %s808, 1
      %s813 = smul.addr %s810, 2
      %s814 = sadd.s32 %s812, %s813
      %s815 = smul.addr %s814, 4
      %s816 = scalar_lea.vmem %s6, %s815
      // Predicated region
      $region45: #{decoder_block_forward.1} parent=43 // pred_check
        %p817 = pneg %p212
      $region46: #{decoder_block_forward.1} parent=43 // pred_check_branch
        %819 = sbr.rel (%p817) target = $region48
      $region47: #{decoder_block_forward.1} parent=43 // pred_region
        %s820 = smul.u32 2, %s22
      $region48: #{decoder_block_forward.1} parent=43 // pred_fallthru
        _
    $region44: #{decoder_block_forward.1} parent=5 // pred_fallthru
      _
    %p821 = scmp.le.s32.totalorder 2, %s12
    // Predicated region
    $region49: #{decoder_block_forward.1} parent=5 // pred_check
      %p822 = pneg %p821
    $region50: #{decoder_block_forward.1} parent=5 // pred_check_branch
      %824 = sbr.rel (%p822) target = $region52
    $region51: #{decoder_block_forward.1} parent=5 // pred_region
      %s825 = ssub.s32 %s12, 2
      // Predicated region
      $region53: #{decoder_block_forward.1} parent=51 // pred_check
        %p826 = pneg %p218
      $region54: #{decoder_block_forward.1} parent=51 // pred_check_branch
        %828 = sbr.rel (%p826) target = $region56
      $region55: #{decoder_block_forward.1} parent=51 // pred_region
        %s829 = smul.u32 2, %s24
        %p830 = scmp.lt.s32.totalorder %s23, 1
        %s831 = scalar_select %p830, %s23, 1
        %p832 = scmp.lt.s32.totalorder %s829, 1
        %s833 = scalar_select %p832, %s829, 1
        %s834 = smul.addr %s831, 2
        %s835 = sadd.s32 %s833, %s834
        %s836 = smul.addr %s835, 4
        %s837 = scalar_lea.vmem %s6, %s836
      $region56: #{decoder_block_forward.1} parent=51 // pred_fallthru
        _
    $region52: #{decoder_block_forward.1} parent=5 // pred_fallthru
      _
  $region6: #{decoder_block_forward.1} parent=0 // loop_footer
    %s16 = sadd.s32 1, %s12
  $region7: #{decoder_block_forward.1} parent=0 // loop_footer_branch
    %11 = sbr.rel target = $region3
  $region8: #{decoder_block_forward.1} parent=0 // loop_exit
    _

</llo_original>
